<compile_context>
chip_gen: v6e
topology: v6e:2x2x1
jax: 0.10.0
libtpu: 0.0.40
codegen_flags: <defaults>
</compile_context>

<pallas_src>
import functools

import jax
import jax.numpy as jnp
from jax.experimental import pallas as pl
from jax.experimental.pallas import tpu as pltpu


def _mlp_kernel(x_ref, w1_ref, b1_ref, w2_ref, b2_ref, w3_ref, b3_ref, o_ref):
    """Transposed fused MLP on one lane-dense batch tile.

    Shapes inside the kernel:
      x_ref  : (1, tm)    batch on lanes
      w1_ref : (H, 1)     b1_ref : (H, 1)
      w2_ref : (H, H)     b2_ref : (H, 1)
      w3_ref : (1, H)     b3_ref : (1,)  in SMEM (scalar)
      o_ref  : (1, tm)
    """
    x = x_ref[...].astype(jnp.float32)                          # (1, tm)

    # Layer 1: K=1 contraction -> pure VPU broadcast mul-add (outer product).
    h1 = jnp.maximum(w1_ref[...] * x + b1_ref[...], 0.0)        # (H, tm)

    # Layer 2: dense H x H matmul on the MXU, lane-dense N = tm.
    h2 = jnp.dot(w2_ref[...], h1, preferred_element_type=jnp.float32) + b2_ref[...]
    h2 = jnp.maximum(h2, 0.0)                                   # (H, tm)

    # Layer 3: (1,H) @ (H,tm) -> lane-dense (1,tm) output; scalar bias from SMEM.
    y = jnp.dot(w3_ref[...], h2, preferred_element_type=jnp.float32) + b3_ref[0]
    o_ref[...] = y.astype(o_ref.dtype)                          # (1, tm)


@functools.partial(jax.jit, static_argnames=("tm",))
def mlp_forward(x, w1, b1, w2, b2, w3, b3, *, tm=512):
    """x: (N, 1) as in the PyTorch module. Returns (N, 1)."""
    N = x.shape[0]
    H = w1.shape[0]

    # Lane-dense presentation: batch on the last (lane) axis, padded to tm.
    n_tiles = pl.cdiv(N, tm)
    Np = n_tiles * tm
    xt = x.reshape(1, N)
    if Np != N:
        xt = jnp.pad(xt, ((0, 0), (0, Np - N)))

    out_t = pl.pallas_call(
        _mlp_kernel,
        out_shape=jax.ShapeDtypeStruct((1, Np), x.dtype),
        grid_spec=pltpu.PrefetchScalarGridSpec(
            num_scalar_prefetch=0,
            grid=(n_tiles,),
            in_specs=[
                pl.BlockSpec((1, tm), lambda i: (0, i)),   # x tile (lane-dense)
                pl.BlockSpec((H, 1), lambda i: (0, 0)),    # w1  (H, 1)
                pl.BlockSpec((H, 1), lambda i: (0, 0)),    # b1  (H, 1)
                pl.BlockSpec((H, H), lambda i: (0, 0)),    # w2  (H, H)
                pl.BlockSpec((H, 1), lambda i: (0, 0)),    # b2  (H, 1)
                pl.BlockSpec((1, H), lambda i: (0, 0)),    # w3  (1, H)
                pl.BlockSpec(memory_space=pltpu.MemorySpace.SMEM),  # b3 scalar
            ],
            out_specs=pl.BlockSpec((1, tm), lambda i: (0, i)),
        ),
        compiler_params=pltpu.CompilerParams(
            dimension_semantics=("parallel",)),
    )(xt, w1, b1, w2, b2, w3, b3)

    return out_t[:, :N].reshape(N, 1)


def init_params(key, hidden_size):
    """PyTorch nn.Linear-style init: U(-1/sqrt(fan_in), +1/sqrt(fan_in)).

    Weights stored in PyTorch (out_features, in_features) layout; biases as
    column vectors (out_features, 1) so they broadcast in the transposed
    compute; b3 is a flat scalar array of shape (1,).
    """
    ks = jax.random.split(key, 6)

    def uni(k, shape, fan_in):
        bound = 1.0 / jnp.sqrt(float(fan_in))
        return jax.random.uniform(k, shape, jnp.float32, -bound, bound)

    H = hidden_size
    w1 = uni(ks[0], (H, 1), 1)
    b1 = uni(ks[1], (H, 1), 1)
    w2 = uni(ks[2], (H, H), H)
    b2 = uni(ks[3], (H, 1), H)
    w3 = uni(ks[4], (1, H), H)
    b3 = uni(ks[5], (1,), H)
    return w1, b1, w2, b2, w3, b3


def mlp_reference(x, w1, b1, w2, b2, w3, b3):
    """Pure-JAX reference in standard (batch, feature) orientation."""
    h1 = jnp.maximum(x @ w1.T + b1.T, 0.0)
    h2 = jnp.maximum(h1 @ w2.T + b2.T, 0.0)
    return h2 @ w3.T + b3


if __name__ == "__main__":
    key = jax.random.PRNGKey(0)
    k_x, k_p = jax.random.split(key)

    N = 500          # batch of scalar samples (not a multiple of tm -> exercises padding)
    H = 64           # hidden size (module default)
    TM = 256         # lane-dense row tile; grid = cdiv(500,256) = 2 steps

    x = jax.random.normal(k_x, (N, 1), jnp.float32)
    params = init_params(k_p, H)

    out = mlp_forward(x, *params, tm=TM)
    out = jax.block_until_ready(out)

    ref = mlp_reference(x, *params)
    assert out.shape == (N, 1)
    assert jnp.allclose(out, ref, atol=1e-5, rtol=1e-5), "mismatch vs reference"

    print("KERNEL_OK")
</pallas_src>

<mosaic_0001>
module attributes {stable_mosaic.version = 11 : i64} {
  func.func @_mlp_kernel(%arg0: i32, %arg1: memref<1x256xf32, #tpu.memory_space<vmem>>, %arg2: memref<64x1xf32, #tpu.memory_space<vmem>>, %arg3: memref<64x1xf32, #tpu.memory_space<vmem>>, %arg4: memref<64x64xf32, #tpu.memory_space<vmem>>, %arg5: memref<64x1xf32, #tpu.memory_space<vmem>>, %arg6: memref<1x64xf32, #tpu.memory_space<vmem>>, %arg7: memref<1xf32, #tpu.memory_space<smem>>, %arg8: memref<1x256xf32, #tpu.memory_space<vmem>>) attributes {dimension_semantics = [#tpu.dimension_semantics<parallel>], iteration_bounds = array<i64: 2>, scalar_prefetch = 0 : i64, scratch_operands = 0 : i64, tpu.core_type = #tpu.core_type<tc>, window_params = [{transform_indices = @transform_0, window_bounds = array<i64: 1, 256>}, {pipeline_mode = #tpu.pipeline_mode<synchronous>, transform_indices = @transform_1, window_bounds = array<i64: 64, 1>}, {pipeline_mode = #tpu.pipeline_mode<synchronous>, transform_indices = @transform_2, window_bounds = array<i64: 64, 1>}, {pipeline_mode = #tpu.pipeline_mode<synchronous>, transform_indices = @transform_3, window_bounds = array<i64: 64, 64>}, {pipeline_mode = #tpu.pipeline_mode<synchronous>, transform_indices = @transform_4, window_bounds = array<i64: 64, 1>}, {pipeline_mode = #tpu.pipeline_mode<synchronous>, transform_indices = @transform_5, window_bounds = array<i64: 1, 64>}, {transform_indices = @transform_6, window_bounds = array<i64: 1>}, {transform_indices = @transform_7, window_bounds = array<i64: 1, 256>}]} {
    %c0 = arith.constant 0 : index
    %c0_0 = arith.constant 0 : index
    %0 = vector.load %arg1[%c0, %c0_0] : memref<1x256xf32, #tpu.memory_space<vmem>>, vector<1x256xf32>
    %c0_1 = arith.constant 0 : index
    %c0_2 = arith.constant 0 : index
    %1 = vector.load %arg2[%c0_1, %c0_2] : memref<64x1xf32, #tpu.memory_space<vmem>>, vector<64x1xf32>
    %2 = vector.broadcast %1 : vector<64x1xf32> to vector<64x256xf32>
    %3 = vector.broadcast %0 : vector<1x256xf32> to vector<64x256xf32>
    %4 = arith.mulf %2, %3 : vector<64x256xf32>
    %c0_3 = arith.constant 0 : index
    %c0_4 = arith.constant 0 : index
    %5 = vector.load %arg3[%c0_3, %c0_4] : memref<64x1xf32, #tpu.memory_space<vmem>>, vector<64x1xf32>
    %6 = vector.broadcast %5 : vector<64x1xf32> to vector<64x256xf32>
    %7 = arith.addf %4, %6 : vector<64x256xf32>
    %cst = arith.constant 0.000000e+00 : f32
    %8 = vector.broadcast %cst : f32 to vector<64x256xf32>
    %9 = arith.maximumf %7, %8 : vector<64x256xf32>
    %c0_5 = arith.constant 0 : index
    %c0_6 = arith.constant 0 : index
    %10 = vector.load %arg4[%c0_5, %c0_6] : memref<64x64xf32, #tpu.memory_space<vmem>>, vector<64x64xf32>
    %cst_7 = arith.constant dense<0.000000e+00> : vector<64x256xf32>
    %11 = tpu.matmul %10, %9, %cst_7 {dimension_numbers = #tpu.dot_dimension_numbers<[1], [0], [0], [1], [0, 0, 1, 1], [], []>} : vector<64x64xf32>, vector<64x256xf32>, vector<64x256xf32> -> vector<64x256xf32>
    %c0_8 = arith.constant 0 : index
    %c0_9 = arith.constant 0 : index
    %12 = vector.load %arg5[%c0_8, %c0_9] : memref<64x1xf32, #tpu.memory_space<vmem>>, vector<64x1xf32>
    %13 = vector.broadcast %12 : vector<64x1xf32> to vector<64x256xf32>
    %14 = arith.addf %11, %13 : vector<64x256xf32>
    %cst_10 = arith.constant 0.000000e+00 : f32
    %15 = vector.broadcast %cst_10 : f32 to vector<64x256xf32>
    %16 = arith.maximumf %14, %15 : vector<64x256xf32>
    %c0_11 = arith.constant 0 : index
    %c0_12 = arith.constant 0 : index
    %17 = vector.load %arg6[%c0_11, %c0_12] : memref<1x64xf32, #tpu.memory_space<vmem>>, vector<1x64xf32>
    %cst_13 = arith.constant dense<0.000000e+00> : vector<1x256xf32>
    %18 = tpu.matmul %17, %16, %cst_13 {dimension_numbers = #tpu.dot_dimension_numbers<[1], [0], [0], [1], [0, 0, 1, 1], [], []>} : vector<1x64xf32>, vector<64x256xf32>, vector<1x256xf32> -> vector<1x256xf32>
    %c0_14 = arith.constant 0 : index
    %19 = memref.load %arg7[%c0_14] : memref<1xf32, #tpu.memory_space<smem>>
    %20 = vector.broadcast %19 : f32 to vector<1x256xf32>
    %21 = arith.addf %18, %20 : vector<1x256xf32>
    %c0_15 = arith.constant 0 : index
    %c0_16 = arith.constant 0 : index
    %22 = vector.load %arg8[%c0_15, %c0_16] : memref<1x256xf32, #tpu.memory_space<vmem>>, vector<1x256xf32>
    tpu.vector_store %arg8[%c0_15, %c0_16], %21 {strides = array<i32>} : memref<1x256xf32, #tpu.memory_space<vmem>>, vector<1x256xf32>,
    return
  }
  func.func @transform_0(%arg0: i32) -> (i32, i32) {
    %c0_i32 = arith.constant 0 : i32
    %c0_i32_0 = arith.constant 0 : i32
    return %c0_i32, %arg0 : i32, i32
  }
  func.func @transform_1(%arg0: i32) -> (i32, i32) {
    %c0_i32 = arith.constant 0 : i32
    %c0_i32_0 = arith.constant 0 : i32
    %c0_i32_1 = arith.constant 0 : i32
    return %c0_i32, %c0_i32_0 : i32, i32
  }
  func.func @transform_2(%arg0: i32) -> (i32, i32) {
    %c0_i32 = arith.constant 0 : i32
    %c0_i32_0 = arith.constant 0 : i32
    %c0_i32_1 = arith.constant 0 : i32
    return %c0_i32, %c0_i32_0 : i32, i32
  }
  func.func @transform_3(%arg0: i32) -> (i32, i32) {
    %c0_i32 = arith.constant 0 : i32
    %c0_i32_0 = arith.constant 0 : i32
    %c0_i32_1 = arith.constant 0 : i32
    return %c0_i32, %c0_i32_0 : i32, i32
  }
  func.func @transform_4(%arg0: i32) -> (i32, i32) {
    %c0_i32 = arith.constant 0 : i32
    %c0_i32_0 = arith.constant 0 : i32
    %c0_i32_1 = arith.constant 0 : i32
    return %c0_i32, %c0_i32_0 : i32, i32
  }
  func.func @transform_5(%arg0: i32) -> (i32, i32) {
    %c0_i32 = arith.constant 0 : i32
    %c0_i32_0 = arith.constant 0 : i32
    %c0_i32_1 = arith.constant 0 : i32
    return %c0_i32, %c0_i32_0 : i32, i32
  }
  func.func @transform_6(%arg0: i32) -> i32 {
    %c0_i32 = arith.constant 0 : i32
    %c0_i32_0 = arith.constant 0 : i32
    return %c0_i32 : i32
  }
  func.func @transform_7(%arg0: i32) -> (i32, i32) {
    %c0_i32 = arith.constant 0 : i32
    %c0_i32_0 = arith.constant 0 : i32
    return %c0_i32, %arg0 : i32, i32
  }
}

</mosaic_0001>

<llo_original>
// kernel: mlp_forward.1
$region0: #{mlp_forward.1}
  #allocation0 [shape = 'u32[]', space=smem, size = 0x4, offset = 0x4, fixed_abs, tag = 'smem constant byte address 0x4 - core index']
  #allocation1 [shape = 'u32[144,128]{1,0:T(1,128)}', space=vmem, size = 0x12000, scoped, tag = 'internal scratch']
  #allocation2 [shape = 'f32[1]{0:T(128)S(6)}', space=smem, size = 0x200, scoped, tag = 'scoped memory for mlp_forward.1']
  %s0 = inlined_call_operand.vmem [shape: f32[1,512], index: 0, kind: input, shape index: {}]
  %s1 = inlined_call_operand.vmem [shape: f32[64,1], index: 1, kind: input, shape index: {}]
  %s2 = inlined_call_operand.vmem [shape: f32[64,1], index: 2, kind: input, shape index: {}]
  %s3 = inlined_call_operand.vmem [shape: f32[64,64], index: 3, kind: input, shape index: {}]
  %s4 = inlined_call_operand.vmem [shape: f32[64,1], index: 4, kind: input, shape index: {}]
  %s5 = inlined_call_operand.vmem [shape: f32[1,64], index: 5, kind: input, shape index: {}]
  %s6 = inlined_call_operand.<no memory space> [shape: f32[1], index: 6, kind: input, shape index: {}]
  %s7 = inlined_call_operand.vmem [shape: f32[1,512], index: 7, kind: output, shape index: {}]
  %s8 = sld [smem:[#allocation0]]
  $region61: #{mlp_forward.1} parent=0
    _
  %s10 = ssub.s32 1, %s8
  %s11 = scalar_select 0, %s10, %s8
  %12 = sst [smem:[#allocation2]] %s6
  loop: start=0, step=1, limit=4
  $region2: #{mlp_forward.1} parent=0 // loop_pre_header
    _
  $region3: #{mlp_forward.1} parent=0 // loop_header
    %s14 = sphi 0, %s18
    %p15 = scmp.ge.s32.totalorder %s14, 4
    %s24 = sphi 0, %s26
    %s27 = sphi 0, %s24
    %s28 = sphi 0, %s27
    %s44 = sphi 0, %s28
    %s48 = sphi 0, %s48
    %s50 = sphi 0, %s48
    %s51 = sphi 0, %s50
    %s65 = sphi 0, %s51
    %s69 = sphi 0, %s69
    %s71 = sphi 0, %s69
    %s72 = sphi 0, %s71
    %s86 = sphi 0, %s72
    %s90 = sphi 0, %s90
    %s92 = sphi 0, %s90
    %s93 = sphi 0, %s92
    %s107 = sphi 0, %s93
    %s111 = sphi 0, %s111
    %s113 = sphi 0, %s111
    %s114 = sphi 0, %s113
    %s128 = sphi 0, %s114
    %s132 = sphi 0, %s132
    %s134 = sphi 0, %s132
    %s135 = sphi 0, %s134
    %s149 = sphi 0, %s135
    %s153 = sphi 0, %s153
    %s155 = sphi 0, %s153
    %s156 = sphi 0, %s155
    %s170 = sphi 0, %s156
    %s176 = sphi 0, %s178
    %s179 = sphi 0, %s176
    %s180 = sphi 0, %s179
    %s196 = sphi 0, %s180
  $region4: #{mlp_forward.1} parent=0 // loop_header_branch
    %17 = sbr.rel (%p15) target = $region8
  $region5: #{mlp_forward.1} parent=0 // loop_body
    %s19 = ssub.s32 %s14, 1
    %s20 = ssub.s32 %s14, 2
    %s21 = sadd.s32 %s14, 1
    %s22 = ssub.s32 %s14, %s21
    %p23 = scmp.eq.s32.totalorder %s22, 0
    %s25 = sadd.s32 %s24, 1
    %s26 = scalar_select %p23, %s24, %s25
    %p29 = pneg %p23
    %p30 = scmp.eq.s32.totalorder %s14, 1
    %p31 = por %p29, %p30
    %p32 = scmp.ne.s32.totalorder %s24, %s27
    %p33 = scmp.eq.s32.totalorder %s14, 0
    %p34 = por %p32, %p33
    %p35 = scmp.ne.s32.totalorder %s24, %s27
    %p36 = scmp.eq.s32.totalorder %s19, 1
    %p37 = por %p35, %p36
    %p38 = scmp.ne.s32.totalorder %s27, %s28
    %p39 = scmp.eq.s32.totalorder %s19, 0
    %p40 = por %p38, %p39
    %p41 = scmp.ne.s32.totalorder %s27, %s28
    %p42 = scmp.eq.s32.totalorder %s20, 1
    %p43 = por %p41, %p42
    %p45 = scmp.ne.s32.totalorder %s28, %s44
    %p46 = scmp.eq.s32.totalorder %s20, 0
    %p47 = por %p45, %p46
    %s49 = sadd.s32 %s48, 1
    %p52 = scmp.eq.s32.totalorder %s14, 1
    %p53 = scmp.ne.s32.totalorder %s48, %s50
    %p54 = scmp.eq.s32.totalorder %s14, 0
    %p55 = por %p53, %p54
    %p56 = scmp.ne.s32.totalorder %s48, %s50
    %p57 = scmp.eq.s32.totalorder %s19, 1
    %p58 = por %p56, %p57
    %p59 = scmp.ne.s32.totalorder %s50, %s51
    %p60 = scmp.eq.s32.totalorder %s19, 0
    %p61 = por %p59, %p60
    %p62 = scmp.ne.s32.totalorder %s50, %s51
    %p63 = scmp.eq.s32.totalorder %s20, 1
    %p64 = por %p62, %p63
    %p66 = scmp.ne.s32.totalorder %s51, %s65
    %p67 = scmp.eq.s32.totalorder %s20, 0
    %p68 = por %p66, %p67
    %s70 = sadd.s32 %s69, 1
    %p73 = scmp.eq.s32.totalorder %s14, 1
    %p74 = scmp.ne.s32.totalorder %s69, %s71
    %p75 = scmp.eq.s32.totalorder %s14, 0
    %p76 = por %p74, %p75
    %p77 = scmp.ne.s32.totalorder %s69, %s71
    %p78 = scmp.eq.s32.totalorder %s19, 1
    %p79 = por %p77, %p78
    %p80 = scmp.ne.s32.totalorder %s71, %s72
    %p81 = scmp.eq.s32.totalorder %s19, 0
    %p82 = por %p80, %p81
    %p83 = scmp.ne.s32.totalorder %s71, %s72
    %p84 = scmp.eq.s32.totalorder %s20, 1
    %p85 = por %p83, %p84
    %p87 = scmp.ne.s32.totalorder %s72, %s86
    %p88 = scmp.eq.s32.totalorder %s20, 0
    %p89 = por %p87, %p88
    %s91 = sadd.s32 %s90, 1
    %p94 = scmp.eq.s32.totalorder %s14, 1
    %p95 = scmp.ne.s32.totalorder %s90, %s92
    %p96 = scmp.eq.s32.totalorder %s14, 0
    %p97 = por %p95, %p96
    %p98 = scmp.ne.s32.totalorder %s90, %s92
    %p99 = scmp.eq.s32.totalorder %s19, 1
    %p100 = por %p98, %p99
    %p101 = scmp.ne.s32.totalorder %s92, %s93
    %p102 = scmp.eq.s32.totalorder %s19, 0
    %p103 = por %p101, %p102
    %p104 = scmp.ne.s32.totalorder %s92, %s93
    %p105 = scmp.eq.s32.totalorder %s20, 1
    %p106 = por %p104, %p105
    %p108 = scmp.ne.s32.totalorder %s93, %s107
    %p109 = scmp.eq.s32.totalorder %s20, 0
    %p110 = por %p108, %p109
    %s112 = sadd.s32 %s111, 1
    %p115 = scmp.eq.s32.totalorder %s14, 1
    %p116 = scmp.ne.s32.totalorder %s111, %s113
    %p117 = scmp.eq.s32.totalorder %s14, 0
    %p118 = por %p116, %p117
    %p119 = scmp.ne.s32.totalorder %s111, %s113
    %p120 = scmp.eq.s32.totalorder %s19, 1
    %p121 = por %p119, %p120
    %p122 = scmp.ne.s32.totalorder %s113, %s114
    %p123 = scmp.eq.s32.totalorder %s19, 0
    %p124 = por %p122, %p123
    %p125 = scmp.ne.s32.totalorder %s113, %s114
    %p126 = scmp.eq.s32.totalorder %s20, 1
    %p127 = por %p125, %p126
    %p129 = scmp.ne.s32.totalorder %s114, %s128
    %p130 = scmp.eq.s32.totalorder %s20, 0
    %p131 = por %p129, %p130
    %s133 = sadd.s32 %s132, 1
    %p136 = scmp.eq.s32.totalorder %s14, 1
    %p137 = scmp.ne.s32.totalorder %s132, %s134
    %p138 = scmp.eq.s32.totalorder %s14, 0
    %p139 = por %p137, %p138
    %p140 = scmp.ne.s32.totalorder %s132, %s134
    %p141 = scmp.eq.s32.totalorder %s19, 1
    %p142 = por %p140, %p141
    %p143 = scmp.ne.s32.totalorder %s134, %s135
    %p144 = scmp.eq.s32.totalorder %s19, 0
    %p145 = por %p143, %p144
    %p146 = scmp.ne.s32.totalorder %s134, %s135
    %p147 = scmp.eq.s32.totalorder %s20, 1
    %p148 = por %p146, %p147
    %p150 = scmp.ne.s32.totalorder %s135, %s149
    %p151 = scmp.eq.s32.totalorder %s20, 0
    %p152 = por %p150, %p151
    %s154 = sadd.s32 %s153, 1
    %p157 = scmp.eq.s32.totalorder %s14, 1
    %p158 = scmp.ne.s32.totalorder %s153, %s155
    %p159 = scmp.eq.s32.totalorder %s14, 0
    %p160 = por %p158, %p159
    %p161 = scmp.ne.s32.totalorder %s153, %s155
    %p162 = scmp.eq.s32.totalorder %s19, 1
    %p163 = por %p161, %p162
    %p164 = scmp.ne.s32.totalorder %s155, %s156
    %p165 = scmp.eq.s32.totalorder %s19, 0
    %p166 = por %p164, %p165
    %p167 = scmp.ne.s32.totalorder %s155, %s156
    %p168 = scmp.eq.s32.totalorder %s20, 1
    %p169 = por %p167, %p168
    %p171 = scmp.ne.s32.totalorder %s156, %s170
    %p172 = scmp.eq.s32.totalorder %s20, 0
    %p173 = por %p171, %p172
    %s174 = ssub.s32 %s14, %s21
    %p175 = scmp.eq.s32.totalorder %s174, 0
    %s177 = sadd.s32 %s176, 1
    %s178 = scalar_select %p175, %s176, %s177
    %p181 = pneg %p175
    %p182 = scmp.eq.s32.totalorder %s14, 1
    %p183 = por %p181, %p182
    %p184 = scmp.ne.s32.totalorder %s176, %s179
    %p185 = scmp.eq.s32.totalorder %s14, 0
    %p186 = por %p184, %p185
    %p187 = scmp.ne.s32.totalorder %s176, %s179
    %p188 = scmp.eq.s32.totalorder %s19, 1
    %p189 = por %p187, %p188
    %p190 = scmp.ne.s32.totalorder %s179, %s180
    %p191 = scmp.eq.s32.totalorder %s19, 0
    %p192 = por %p190, %p191
    %p193 = scmp.ne.s32.totalorder %s179, %s180
    %p194 = scmp.eq.s32.totalorder %s20, 1
    %p195 = por %p193, %p194
    %p197 = scmp.ne.s32.totalorder %s180, %s196
    %p198 = scmp.eq.s32.totalorder %s20, 0
    %p199 = por %p197, %p198
    %p200 = scmp.le.s32.totalorder 1, %s14
    %p201 = scmp.lt.s32.totalorder %s14, 3
    %p202 = pnand %p200, %p201
    %p203 = pneg %p202
    // Predicated region
    $region9: #{mlp_forward.1} parent=5 // pred_check
      _
    $region10: #{mlp_forward.1} parent=5 // pred_check_branch
      %205 = sbr.rel (%p202) target = $region12
    $region11: #{mlp_forward.1} parent=5 // pred_region
      %s206 = ssub.s32 %s14, 1
      // Predicated region
      $region13: #{mlp_forward.1} parent=11 // pred_check
        %p207 = pneg %p61
      $region14: #{mlp_forward.1} parent=11 // pred_check_branch
        %209 = sbr.rel (%p207) target = $region16
      $region15: #{mlp_forward.1} parent=11 // pred_region
        _
      $region16: #{mlp_forward.1} parent=11 // pred_fallthru
        _
      // Predicated region
      $region17: #{mlp_forward.1} parent=11 // pred_check
        %p210 = pneg %p82
      $region18: #{mlp_forward.1} parent=11 // pred_check_branch
        %212 = sbr.rel (%p210) target = $region20
      $region19: #{mlp_forward.1} parent=11 // pred_region
        _
      $region20: #{mlp_forward.1} parent=11 // pred_fallthru
        _
      // Predicated region
      $region21: #{mlp_forward.1} parent=11 // pred_check
        %p213 = pneg %p103
      $region22: #{mlp_forward.1} parent=11 // pred_check_branch
        %215 = sbr.rel (%p213) target = $region24
      $region23: #{mlp_forward.1} parent=11 // pred_region
        _
      $region24: #{mlp_forward.1} parent=11 // pred_fallthru
        _
      // Predicated region
      $region25: #{mlp_forward.1} parent=11 // pred_check
        %p216 = pneg %p124
      $region26: #{mlp_forward.1} parent=11 // pred_check_branch
        %218 = sbr.rel (%p216) target = $region28
      $region27: #{mlp_forward.1} parent=11 // pred_region
        _
      $region28: #{mlp_forward.1} parent=11 // pred_fallthru
        _
      // Predicated region
      $region29: #{mlp_forward.1} parent=11 // pred_check
        %p219 = pneg %p145
      $region30: #{mlp_forward.1} parent=11 // pred_check_branch
        %221 = sbr.rel (%p219) target = $region32
      $region31: #{mlp_forward.1} parent=11 // pred_region
        _
      $region32: #{mlp_forward.1} parent=11 // pred_fallthru
        _
      // Predicated region
      $region33: #{mlp_forward.1} parent=11 // pred_check
        %p222 = pneg %p166
      $region34: #{mlp_forward.1} parent=11 // pred_check_branch
        %224 = sbr.rel (%p222) target = $region36
      $region35: #{mlp_forward.1} parent=11 // pred_region
        _
      $region36: #{mlp_forward.1} parent=11 // pred_fallthru
        _
    $region12: #{mlp_forward.1} parent=5 // pred_fallthru
      _
    %p225 = scmp.lt.s32.totalorder %s14, 2
    // Predicated region
    $region37: #{mlp_forward.1} parent=5 // pred_check
      %p226 = pneg %p225
    $region38: #{mlp_forward.1} parent=5 // pred_check_branch
      %228 = sbr.rel (%p226) target = $region40
    $region39: #{mlp_forward.1} parent=5 // pred_region
      // Predicated region
      $region41: #{mlp_forward.1} parent=39 // pred_check
        %p229 = pneg %p34
      $region42: #{mlp_forward.1} parent=39 // pred_check_branch
        %231 = sbr.rel (%p229) target = $region44
      $region43: #{mlp_forward.1} parent=39 // pred_region
        %s232 = smul.u32 2, %s14
        %p233 = scmp.lt.s32.totalorder %s232, 3
        %s234 = scalar_select %p233, %s232, 3
        %s235 = scalar_lea.vmem %s0, %s234
        %s236 = smul.u32 2, %s14
      $region44: #{mlp_forward.1} parent=39 // pred_fallthru
        _
    $region40: #{mlp_forward.1} parent=5 // pred_fallthru
      _
    %p237 = scmp.le.s32.totalorder 1, %s14
    %p238 = scmp.lt.s32.totalorder %s14, 3
    %p239 = pnand %p237, %p238
    %p240 = pneg %p239
    // Predicated region
    $region45: #{mlp_forward.1} parent=5 // pred_check
      _
    $region46: #{mlp_forward.1} parent=5 // pred_check_branch
      %242 = sbr.rel (%p239) target = $region48
    $region47: #{mlp_forward.1} parent=5 // pred_region
      %s243 = ssub.s32 %s14, 1
      %s244 = smul.u32 2, %s19
      %p245 = scmp.lt.s32.totalorder %s244, 3
      %s246 = scalar_select %p245, %s244, 3
      %s247 = scalar_lea.vmem %s0, %s246
      %p248 = pneg %p40
      %p249 = pneg %p37
      %p250 = pneg %p61
      %p251 = pneg %p58
      %p252 = pneg %p82
      %p253 = pneg %p79
      %p254 = pneg %p103
      %p255 = pneg %p100
      %p256 = pneg %p124
      %p257 = pneg %p121
      %p258 = pneg %p145
      %p259 = pneg %p142
      %p260 = pneg %p166
      %p261 = pneg %p163
      %p262 = pneg %p192
      %p263 = pneg %p189
      %s264 = smul.u32 2, %s19
      %p265 = scmp.lt.s32.totalorder %s264, 3
      %s266 = scalar_select %p265, %s264, 3
      %s267 = scalar_lea.vmem %s7, %s266
      %s268 = smul.u32 2, %s19
      %p269 = scmp.lt.s32.totalorder %s268, 3
      %s270 = scalar_select %p269, %s268, 3
      %s271 = scalar_lea.vmem %s0, %s270
      %s272 = smul.u32 2, %s19
      %s273 = smul.u32 2, %s19
      %p274 = scmp.lt.s32.totalorder %s273, 3
      %s275 = scalar_select %p274, %s273, 3
      %s276 = scalar_lea.vmem %s7, %s275
      %s277 = smul.u32 2, %s19
      %v278 = vld [vmem:[%s271] sm:$0x3]
      %v279 = vld [vmem:[%s1] sm:$0xff]
      %v280 = vld [vmem:[%s1 + $0x8] sm:$0xff]
      %v281 = vld [vmem:[%s1 + $0x10] sm:$0xff]
      %v282 = vld [vmem:[%s1 + $0x18] sm:$0xff]
      %v283 = vld [vmem:[%s1 + $0x20] sm:$0xff]
      %v284 = vld [vmem:[%s1 + $0x28] sm:$0xff]
      %v285 = vld [vmem:[%s1 + $0x30] sm:$0xff]
      %v286 = vld [vmem:[%s1 + $0x38] sm:$0xff]
      %288 = vset.pattern.permute.xlu0 0
      %289 = vperm.xlu0 %288, %v279
      %v290 = vpop.permute.xlu0 %289
      %293 = vset.pattern.permute.xlu0 0
      %294 = vperm.xlu0 %293, %v280
      %v295 = vpop.permute.xlu0 %294
      %298 = vset.pattern.permute.xlu0 0
      %299 = vperm.xlu0 %298, %v281
      %v300 = vpop.permute.xlu0 %299
      %303 = vset.pattern.permute.xlu0 0
      %304 = vperm.xlu0 %303, %v282
      %v305 = vpop.permute.xlu0 %304
      %308 = vset.pattern.permute.xlu0 0
      %309 = vperm.xlu0 %308, %v283
      %v310 = vpop.permute.xlu0 %309
      %313 = vset.pattern.permute.xlu0 0
      %314 = vperm.xlu0 %313, %v284
      %v315 = vpop.permute.xlu0 %314
      %318 = vset.pattern.permute.xlu0 0
      %319 = vperm.xlu0 %318, %v285
      %v320 = vpop.permute.xlu0 %319
      %323 = vset.pattern.permute.xlu0 0
      %324 = vperm.xlu0 %323, %v286
      %v325 = vpop.permute.xlu0 %324
      %v328 = vlaneseq
      %v329 = vshrl.u32 %v328, 7
      %v330 = vsub.s32 0, %v329
      %v331 = vrot.slane %v278, %v330
      %v332 = vlaneseq
      %v333 = vshrl.u32 %v332, 7
      %v334 = vsub.s32 1, %v333
      %v335 = vrot.slane %v278, %v334
      %v338 = vmul.f32 %v290, %v331
      %v339 = vmul.f32 %v290, %v335
      %v340 = vmul.f32 %v295, %v331
      %v341 = vmul.f32 %v295, %v335
      %v342 = vmul.f32 %v300, %v331
      %v343 = vmul.f32 %v300, %v335
      %v344 = vmul.f32 %v305, %v331
      %v345 = vmul.f32 %v305, %v335
      %v346 = vmul.f32 %v310, %v331
      %v347 = vmul.f32 %v310, %v335
      %v348 = vmul.f32 %v315, %v331
      %v349 = vmul.f32 %v315, %v335
      %v350 = vmul.f32 %v320, %v331
      %v351 = vmul.f32 %v320, %v335
      %v352 = vmul.f32 %v325, %v331
      %v353 = vmul.f32 %v325, %v335
      %v354 = vld [vmem:[%s2] sm:$0xff]
      %v355 = vld [vmem:[%s2 + $0x8] sm:$0xff]
      %v356 = vld [vmem:[%s2 + $0x10] sm:$0xff]
      %v357 = vld [vmem:[%s2 + $0x18] sm:$0xff]
      %v358 = vld [vmem:[%s2 + $0x20] sm:$0xff]
      %v359 = vld [vmem:[%s2 + $0x28] sm:$0xff]
      %v360 = vld [vmem:[%s2 + $0x30] sm:$0xff]
      %v361 = vld [vmem:[%s2 + $0x38] sm:$0xff]
      %363 = vset.pattern.permute.xlu0 0
      %364 = vperm.xlu0 %363, %v354
      %v365 = vpop.permute.xlu0 %364
      %368 = vset.pattern.permute.xlu0 0
      %369 = vperm.xlu0 %368, %v355
      %v370 = vpop.permute.xlu0 %369
      %373 = vset.pattern.permute.xlu0 0
      %374 = vperm.xlu0 %373, %v356
      %v375 = vpop.permute.xlu0 %374
      %378 = vset.pattern.permute.xlu0 0
      %379 = vperm.xlu0 %378, %v357
      %v380 = vpop.permute.xlu0 %379
      %383 = vset.pattern.permute.xlu0 0
      %384 = vperm.xlu0 %383, %v358
      %v385 = vpop.permute.xlu0 %384
      %388 = vset.pattern.permute.xlu0 0
      %389 = vperm.xlu0 %388, %v359
      %v390 = vpop.permute.xlu0 %389
      %393 = vset.pattern.permute.xlu0 0
      %394 = vperm.xlu0 %393, %v360
      %v395 = vpop.permute.xlu0 %394
      %398 = vset.pattern.permute.xlu0 0
      %399 = vperm.xlu0 %398, %v361
      %v400 = vpop.permute.xlu0 %399
      %v402 = vadd.f32 %v338, %v365
      %v403 = vadd.f32 %v339, %v365
      %v404 = vadd.f32 %v340, %v370
      %v405 = vadd.f32 %v341, %v370
      %v406 = vadd.f32 %v342, %v375
      %v407 = vadd.f32 %v343, %v375
      %v408 = vadd.f32 %v344, %v380
      %v409 = vadd.f32 %v345, %v380
      %v410 = vadd.f32 %v346, %v385
      %v411 = vadd.f32 %v347, %v385
      %v412 = vadd.f32 %v348, %v390
      %v413 = vadd.f32 %v349, %v390
      %v414 = vadd.f32 %v350, %v395
      %v415 = vadd.f32 %v351, %v395
      %v416 = vadd.f32 %v352, %v400
      %v417 = vadd.f32 %v353, %v400
      %v418 = vmax.f32 %v402, 0.0
      %v419 = vmax.f32 %v403, 0.0
      %v420 = vmax.f32 %v404, 0.0
      %v421 = vmax.f32 %v405, 0.0
      %v422 = vmax.f32 %v406, 0.0
      %v423 = vmax.f32 %v407, 0.0
      %v424 = vmax.f32 %v408, 0.0
      %v425 = vmax.f32 %v409, 0.0
      %v426 = vmax.f32 %v410, 0.0
      %v427 = vmax.f32 %v411, 0.0
      %v428 = vmax.f32 %v412, 0.0
      %v429 = vmax.f32 %v413, 0.0
      %v430 = vmax.f32 %v414, 0.0
      %v431 = vmax.f32 %v415, 0.0
      %v432 = vmax.f32 %v416, 0.0
      %v433 = vmax.f32 %v417, 0.0
      %v434 = vld [vmem:[%s3] sm:$0xff]
      %v435 = vld [vmem:[%s3 + $0x8] sm:$0xff]
      %v436 = vld [vmem:[%s3 + $0x10] sm:$0xff]
      %v437 = vld [vmem:[%s3 + $0x18] sm:$0xff]
      %v438 = vld [vmem:[%s3 + $0x20] sm:$0xff]
      %v439 = vld [vmem:[%s3 + $0x28] sm:$0xff]
      %v440 = vld [vmem:[%s3 + $0x30] sm:$0xff]
      %v441 = vld [vmem:[%s3 + $0x38] sm:$0xff]
      %v442 = vld [vmem:[%s4] sm:$0xff]
      %v443 = vld [vmem:[%s4 + $0x8] sm:$0xff]
      %v444 = vld [vmem:[%s4 + $0x10] sm:$0xff]
      %v445 = vld [vmem:[%s4 + $0x18] sm:$0xff]
      %v446 = vld [vmem:[%s4 + $0x20] sm:$0xff]
      %v447 = vld [vmem:[%s4 + $0x28] sm:$0xff]
      %v448 = vld [vmem:[%s4 + $0x30] sm:$0xff]
      %v449 = vld [vmem:[%s4 + $0x38] sm:$0xff]
      %451 = vset.pattern.permute.xlu0 0
      %452 = vperm.xlu0 %451, %v442
      %v453 = vpop.permute.xlu0 %452
      %456 = vset.pattern.permute.xlu0 0
      %457 = vperm.xlu0 %456, %v443
      %v458 = vpop.permute.xlu0 %457
      %461 = vset.pattern.permute.xlu0 0
      %462 = vperm.xlu0 %461, %v444
      %v463 = vpop.permute.xlu0 %462
      %466 = vset.pattern.permute.xlu0 0
      %467 = vperm.xlu0 %466, %v445
      %v468 = vpop.permute.xlu0 %467
      %471 = vset.pattern.permute.xlu0 0
      %472 = vperm.xlu0 %471, %v446
      %v473 = vpop.permute.xlu0 %472
      %476 = vset.pattern.permute.xlu0 0
      %477 = vperm.xlu0 %476, %v447
      %v478 = vpop.permute.xlu0 %477
      %481 = vset.pattern.permute.xlu0 0
      %482 = vperm.xlu0 %481, %v448
      %v483 = vpop.permute.xlu0 %482
      %486 = vset.pattern.permute.xlu0 0
      %487 = vperm.xlu0 %486, %v449
      %v488 = vpop.permute.xlu0 %487
      %vm490 = vcmask 523264
      %v492 = vsel %vm490, %v434, 0
      %v495 = vsel %vm490, %v435, 0
      %v498 = vsel %vm490, %v436, 0
      %v501 = vsel %vm490, %v437, 0
      %v504 = vsel %vm490, %v438, 0
      %v507 = vsel %vm490, %v439, 0
      %v510 = vsel %vm490, %v440, 0
      %v513 = vsel %vm490, %v441, 0
      %515 = vmatprep.subr.mxu0 0.0
      %516 = vmatpush1.msra.mxu0 0.0
      %517 = vmatprep.subr.mxu0 0.0
      %518 = vmatpush1.msra.mxu0 0.0
      %519 = vmatprep.subr.mxu0 0.0
      %520 = vmatpush1.msra.mxu0 0.0
      %521 = vmatprep.subr.mxu0 0.0
      %522 = vmatpush1.msra.mxu0 0.0
      %523 = vmatprep.subr.mxu0 0.0
      %524 = vmatpush1.msra.mxu0 0.0
      %525 = vmatprep.subr.mxu0 0.0
      %526 = vmatpush1.msra.mxu0 0.0
      %527 = vmatprep.subr.mxu0 0.0
      %528 = vmatpush1.msra.mxu0 0.0
      %529 = vmatprep.subr.mxu0 0.0
      %530 = vmatpush1.msra.mxu0 0.0
      %531 = vmatprep.subr.mxu0 %v433
      %532 = vmatpush1.msra.mxu0 %v432
      %533 = vmatprep.subr.mxu0 %v431
      %534 = vmatpush1.msra.mxu0 %v430
      %535 = vmatprep.subr.mxu0 %v429
      %536 = vmatpush1.msra.mxu0 %v428
      %537 = vmatprep.subr.mxu0 %v427
      %538 = vmatpush1.msra.mxu0 %v426
      %539 = vmatprep.subr.mxu0 %v425
      %540 = vmatpush1.msra.mxu0 %v424
      %541 = vmatprep.subr.mxu0 %v423
      %542 = vmatpush1.msra.mxu0 %v422
      %543 = vmatprep.subr.mxu0 %v421
      %544 = vmatpush1.msra.mxu0 %v420
      %545 = vmatprep.subr.mxu0 %v419
      %546 = vmatpush1.msra.mxu0 %v418
      %547 = vmatprep.subr.mxu0 0.0
      %548 = vmatpush2.msra.mxu0 0.0
      %549 = vmatprep.subr.mxu0 0.0
      %550 = vmatpush2.msra.mxu0 0.0
      %551 = vmatprep.subr.mxu0 0.0
      %552 = vmatpush2.msra.mxu0 0.0
      %553 = vmatprep.subr.mxu0 0.0
      %554 = vmatpush2.msra.mxu0 0.0
      %555 = vmatprep.subr.mxu0 0.0
      %556 = vmatpush2.msra.mxu0 0.0
      %557 = vmatprep.subr.mxu0 0.0
      %558 = vmatpush2.msra.mxu0 0.0
      %559 = vmatprep.subr.mxu0 0.0
      %560 = vmatpush2.msra.mxu0 0.0
      %561 = vmatprep.subr.mxu0 0.0
      %562 = vmatpush2.msra.mxu0 0.0
      %563 = vmatprep.subr.mxu0 0.0
      %564 = vmatpush2.msra.mxu0 0.0
      %565 = vmatprep.subr.mxu0 0.0
      %566 = vmatpush2.msra.mxu0 0.0
      %567 = vmatprep.subr.mxu0 0.0
      %568 = vmatpush2.msra.mxu0 0.0
      %569 = vmatprep.subr.mxu0 0.0
      %570 = vmatpush2.msra.mxu0 0.0
      %571 = vmatprep.subr.mxu0 0.0
      %572 = vmatpush2.msra.mxu0 0.0
      %573 = vmatprep.subr.mxu0 0.0
      %574 = vmatpush2.msra.mxu0 0.0
      %575 = vmatprep.subr.mxu0 0.0
      %576 = vmatpush2.msra.mxu0 0.0
      %577 = vmatprep.subr.mxu0 0.0
      %578 = vmatpush2.msra.mxu0 0.0
      %579 = vmatprep.mubr.f32.mxu0 0.0
      %580 = vmatmul.mubr.f32.gmra.mxu0 %v492
      %v581 = vpop.f32.mrf.mxu0
      %v582 = vadd.f32 %v453, %v581
      %v583 = vpop.f32.mrf.mxu0
      %v584 = vadd.f32 %v453, %v583
      %585 = vmatprep.mubr.f32.mxu0 0.0
      %586 = vmatmul.mubr.f32.gmra.mxu0 %v495
      %v587 = vpop.f32.mrf.mxu0
      %v588 = vadd.f32 %v458, %v587
      %v589 = vpop.f32.mrf.mxu0
      %v590 = vadd.f32 %v458, %v589
      %591 = vmatprep.mubr.f32.mxu0 0.0
      %592 = vmatmul.mubr.f32.gmra.mxu0 %v498
      %v593 = vpop.f32.mrf.mxu0
      %v594 = vadd.f32 %v463, %v593
      %v595 = vpop.f32.mrf.mxu0
      %v596 = vadd.f32 %v463, %v595
      %597 = vmatprep.mubr.f32.mxu0 0.0
      %598 = vmatmul.mubr.f32.gmra.mxu0 %v501
      %v599 = vpop.f32.mrf.mxu0
      %v600 = vadd.f32 %v468, %v599
      %v601 = vpop.f32.mrf.mxu0
      %v602 = vadd.f32 %v468, %v601
      %603 = vmatprep.mubr.f32.mxu0 0.0
      %604 = vmatmul.mubr.f32.gmra.mxu0 %v504
      %v605 = vpop.f32.mrf.mxu0
      %v606 = vadd.f32 %v473, %v605
      %v607 = vpop.f32.mrf.mxu0
      %v608 = vadd.f32 %v473, %v607
      %609 = vmatprep.mubr.f32.mxu0 0.0
      %610 = vmatmul.mubr.f32.gmra.mxu0 %v507
      %v611 = vpop.f32.mrf.mxu0
      %v612 = vadd.f32 %v478, %v611
      %v613 = vpop.f32.mrf.mxu0
      %v614 = vadd.f32 %v478, %v613
      %615 = vmatprep.mubr.f32.mxu0 0.0
      %616 = vmatmul.mubr.f32.gmra.mxu0 %v510
      %v617 = vpop.f32.mrf.mxu0
      %v618 = vadd.f32 %v483, %v617
      %v619 = vpop.f32.mrf.mxu0
      %v620 = vadd.f32 %v483, %v619
      %621 = vmatprep.mubr.f32.mxu0 0.0
      %622 = vmatmul.mubr.f32.gmra.mxu0 %v513
      %v623 = vpop.f32.mrf.mxu0
      %v624 = vadd.f32 %v488, %v623
      %v625 = vpop.f32.mrf.mxu0
      %v626 = vadd.f32 %v488, %v625
      %627 = vdwg.mxu0
      %v628 = vmax.f32 %v582, 0.0
      %v629 = vmax.f32 %v584, 0.0
      %v630 = vmax.f32 %v588, 0.0
      %v631 = vmax.f32 %v590, 0.0
      %v632 = vmax.f32 %v594, 0.0
      %v633 = vmax.f32 %v596, 0.0
      %v634 = vmax.f32 %v600, 0.0
      %v635 = vmax.f32 %v602, 0.0
      %v636 = vmax.f32 %v606, 0.0
      %v637 = vmax.f32 %v608, 0.0
      %v638 = vmax.f32 %v612, 0.0
      %v639 = vmax.f32 %v614, 0.0
      %v640 = vmax.f32 %v618, 0.0
      %v641 = vmax.f32 %v620, 0.0
      %v642 = vmax.f32 %v624, 0.0
      %v643 = vmax.f32 %v626, 0.0
      %v644 = vld [vmem:[%s5] sm:$0x1]
      %s645 = sld [smem:[#allocation2]]
      %v646 = vstv %s645
      %v648 = vsel %vm490, %v644, 0
      %650 = vmatprep.subr.mxu0 0.0
      %651 = vmatpush1.msra.mxu0 0.0
      %652 = vmatprep.subr.mxu0 0.0
      %653 = vmatpush1.msra.mxu0 0.0
      %654 = vmatprep.subr.mxu0 0.0
      %655 = vmatpush1.msra.mxu0 0.0
      %656 = vmatprep.subr.mxu0 0.0
      %657 = vmatpush1.msra.mxu0 0.0
      %658 = vmatprep.subr.mxu0 0.0
      %659 = vmatpush1.msra.mxu0 0.0
      %660 = vmatprep.subr.mxu0 0.0
      %661 = vmatpush1.msra.mxu0 0.0
      %662 = vmatprep.subr.mxu0 0.0
      %663 = vmatpush1.msra.mxu0 0.0
      %664 = vmatprep.subr.mxu0 0.0
      %665 = vmatpush1.msra.mxu0 0.0
      %666 = vmatprep.subr.mxu0 %v643
      %667 = vmatpush1.msra.mxu0 %v642
      %668 = vmatprep.subr.mxu0 %v641
      %669 = vmatpush1.msra.mxu0 %v640
      %670 = vmatprep.subr.mxu0 %v639
      %671 = vmatpush1.msra.mxu0 %v638
      %672 = vmatprep.subr.mxu0 %v637
      %673 = vmatpush1.msra.mxu0 %v636
      %674 = vmatprep.subr.mxu0 %v635
      %675 = vmatpush1.msra.mxu0 %v634
      %676 = vmatprep.subr.mxu0 %v633
      %677 = vmatpush1.msra.mxu0 %v632
      %678 = vmatprep.subr.mxu0 %v631
      %679 = vmatpush1.msra.mxu0 %v630
      %680 = vmatprep.subr.mxu0 %v629
      %681 = vmatpush1.msra.mxu0 %v628
      %682 = vmatprep.subr.mxu0 0.0
      %683 = vmatpush2.msra.mxu0 0.0
      %684 = vmatprep.subr.mxu0 0.0
      %685 = vmatpush2.msra.mxu0 0.0
      %686 = vmatprep.subr.mxu0 0.0
      %687 = vmatpush2.msra.mxu0 0.0
      %688 = vmatprep.subr.mxu0 0.0
      %689 = vmatpush2.msra.mxu0 0.0
      %690 = vmatprep.subr.mxu0 0.0
      %691 = vmatpush2.msra.mxu0 0.0
      %692 = vmatprep.subr.mxu0 0.0
      %693 = vmatpush2.msra.mxu0 0.0
      %694 = vmatprep.subr.mxu0 0.0
      %695 = vmatpush2.msra.mxu0 0.0
      %696 = vmatprep.subr.mxu0 0.0
      %697 = vmatpush2.msra.mxu0 0.0
      %698 = vmatprep.subr.mxu0 0.0
      %699 = vmatpush2.msra.mxu0 0.0
      %700 = vmatprep.subr.mxu0 0.0
      %701 = vmatpush2.msra.mxu0 0.0
      %702 = vmatprep.subr.mxu0 0.0
      %703 = vmatpush2.msra.mxu0 0.0
      %704 = vmatprep.subr.mxu0 0.0
      %705 = vmatpush2.msra.mxu0 0.0
      %706 = vmatprep.subr.mxu0 0.0
      %707 = vmatpush2.msra.mxu0 0.0
      %708 = vmatprep.subr.mxu0 0.0
      %709 = vmatpush2.msra.mxu0 0.0
      %710 = vmatprep.subr.mxu0 0.0
      %711 = vmatpush2.msra.mxu0 0.0
      %712 = vmatprep.subr.mxu0 0.0
      %713 = vmatpush2.msra.mxu0 0.0
      %714 = vmatprep.mubr.f32.mxu0 0.0
      %715 = vmatmul.mubr.f32.gmra.mxu0 %v648
      %v716 = vpop.f32.mrf.mxu0
      %v717 = vadd.f32 %v646, %v716
      %v718 = vpop.f32.mrf.mxu0
      %v719 = vadd.f32 %v646, %v718
      %720 = vdwg.mxu0
      %v723 = vcombine.low %v717, %v719
      %v725 = vunpack.c.l.s4 1966171168
      %v726 = vunpack.c.0.s8 %v725
      %v727 = vlaneseq
      %v728 = vshrl.u32 %v727, 7
      %v729 = vsub.s32 %v726, %v728
      %v730 = vrot.slane %v723, %v729
      %v732 = vunpack.c.l.s4 1966171168
      %v733 = vunpack.c.0.s8 %v732
      %v734 = vlaneseq
      %v735 = vshrl.u32 %v734, 7
      %v736 = vsub.s32 %v733, %v735
      %v737 = vrot.slane %v730, %v736
      %v739 = vlaneseq
      %vm740 = vcmp.ge.s32.totalorder %v739, 0
      %vm741 = vcmp.lt.s32.totalorder %v739, 256
      %vm742 = vmand %vm740, %vm741
      %743 = vst.msk [vmem:[%s276] sm:$0x3] %vm742, %v737
      %s744 = smul.u32 2, %s19
      %p745 = scmp.lt.s32.totalorder %s744, 3
      %s746 = scalar_select %p745, %s744, 3
      %s747 = scalar_lea.vmem %s7, %s746
      // Predicated region
      $region49: #{mlp_forward.1} parent=47 // pred_check
        %p748 = pneg %p189
      $region50: #{mlp_forward.1} parent=47 // pred_check_branch
        %750 = sbr.rel (%p748) target = $region52
      $region51: #{mlp_forward.1} parent=47 // pred_region
        %s751 = smul.u32 2, %s19
      $region52: #{mlp_forward.1} parent=47 // pred_fallthru
        _
    $region48: #{mlp_forward.1} parent=5 // pred_fallthru
      _
    %p752 = scmp.le.s32.totalorder 2, %s14
    // Predicated region
    $region53: #{mlp_forward.1} parent=5 // pred_check
      %p753 = pneg %p752
    $region54: #{mlp_forward.1} parent=5 // pred_check_branch
      %755 = sbr.rel (%p753) target = $region56
    $region55: #{mlp_forward.1} parent=5 // pred_region
      %s756 = ssub.s32 %s14, 2
      // Predicated region
      $region57: #{mlp_forward.1} parent=55 // pred_check
        %p757 = pneg %p195
      $region58: #{mlp_forward.1} parent=55 // pred_check_branch
        %759 = sbr.rel (%p757) target = $region60
      $region59: #{mlp_forward.1} parent=55 // pred_region
        %s760 = smul.u32 2, %s20
        %p761 = scmp.lt.s32.totalorder %s760, 3
        %s762 = scalar_select %p761, %s760, 3
        %s763 = scalar_lea.vmem %s7, %s762
      $region60: #{mlp_forward.1} parent=55 // pred_fallthru
        _
    $region56: #{mlp_forward.1} parent=5 // pred_fallthru
      _
  $region6: #{mlp_forward.1} parent=0 // loop_footer
    %s18 = sadd.s32 1, %s14
  $region7: #{mlp_forward.1} parent=0 // loop_footer_branch
    %13 = sbr.rel target = $region3
  $region8: #{mlp_forward.1} parent=0 // loop_exit
    _

</llo_original>
